<compile_context>
chip_gen: v7x
topology: tpu7x:2x2x1
jax: 0.10.0
libtpu: 0.0.40
codegen_flags: <defaults>
</compile_context>

<pallas_src>
import jax
import jax.numpy as jnp
from jax.experimental import pallas as pl
from jax.experimental.pallas import tpu as pltpu


def _round_up(x, m):
    return (x + m - 1) // m * m


def _im2col_matmul_kernel(p_ref, w_ref, b_ref, o_ref):
    """out = patches @ W + b for one (tm, 9C) im2col tile.

    Single MXU dot with K = 9*C, f32 accumulation, f32 bias add, then cast to
    the output dtype.  Weight / bias refs have constant block indices and are
    VMEM-resident across the whole grid.
    """
    acc = jnp.dot(p_ref[...], w_ref[...], preferred_element_type=jnp.float32)
    o_ref[...] = (acc + b_ref[...]).astype(o_ref.dtype)


def downsample_forward_nhwc(x_nhwc, weight, bias, *, tm=512,
                            compute_dtype=jnp.bfloat16, out_dtype=None):
    """Conv2d(C, C, k=3, s=2, p=1) on an NHWC input; returns NHWC output."""
    B, H, W, C = x_nhwc.shape
    Co, Ci, KH, KW = weight.shape
    assert Ci == C and KH == 3 and KW == 3
    if out_dtype is None:
        out_dtype = x_nhwc.dtype          # match the module's dtype by default
    Ho = (H + 2 - 3) // 2 + 1
    Wo = (W + 2 - 3) // 2 + 1
    M = B * Ho * Wo
    K9 = 9 * Ci

    # ---- tiling geometry -------------------------------------------------
    # tm multiple of 16 (bf16 sublane packing); N padded to a lane multiple so
    # output stores are unmasked.  Keep >= 2 M tiles when M allows so the
    # "parallel" axis can be sharded across v7x's 2 TensorCores.
    tm = _round_up(max(16, min(tm, _round_up(M, 16))), 16)
    if _round_up(M, tm) == tm and M > 16:
        tm = _round_up(max(tm // 2, 16), 16)
    M_pad = _round_up(M, tm)
    N_pad = _round_up(Co, 128)
    grid_m = M_pad // tm

    # ---- XLA glue: bf16 cast, spatial pad, im2col (M_pad, 9*C) ------------
    # Cast *before* the gather so the pad/slice/concat pass moves bf16 bytes.
    xb = x_nhwc.astype(compute_dtype)
    xp = jnp.pad(xb, ((0, 0), (1, 1), (1, 1), (0, 0)))        # (B, H+2, W+2, C)
    cols = []
    for kh in range(3):
        for kw in range(3):
            v = xp[:, kh:kh + 2 * Ho - 1:2, kw:kw + 2 * Wo - 1:2, :]
            cols.append(v.reshape(M, C))
    patches = jnp.concatenate(cols, axis=-1)                   # (M, 9*C)
    if M_pad != M:
        patches = jnp.pad(patches, ((0, M_pad - M), (0, 0)))

    # weight (Co, Ci, 3, 3) -> (kh, kw, ci, co) -> (9*Ci, Co); matches the
    # (kh, kw, ci) ordering of the im2col K axis.  Pad co to N_pad, bf16.
    w2 = jnp.transpose(weight, (2, 3, 1, 0)).reshape(K9, Co)
    w2 = jnp.pad(w2, ((0, 0), (0, N_pad - Co))).astype(compute_dtype)
    b2 = jnp.pad(bias, (0, N_pad - Co)).reshape(1, N_pad).astype(jnp.float32)

    # ---- pallas_call -------------------------------------------------------
    out_itemsize = jnp.dtype(out_dtype).itemsize
    cdt_itemsize = jnp.dtype(compute_dtype).itemsize
    flops = 2 * M_pad * K9 * N_pad
    bytes_accessed = (M_pad * K9 * cdt_itemsize        # im2col read
                      + K9 * N_pad * cdt_itemsize      # weight read (once)
                      + N_pad * 4                      # bias read (once)
                      + M_pad * N_pad * out_itemsize)  # output write
    # VMEM: double-buffered patch tiles + resident weight/bias + double-
    # buffered output tiles; 2x headroom, capped below v7x's 64 MiB budget
    # unless the shapes genuinely need more (v5e/v6e have 128 MiB physical).
    est_vmem = (2 * tm * K9 * cdt_itemsize
                + 2 * K9 * N_pad * cdt_itemsize
                + 2 * N_pad * 4
                + 2 * tm * N_pad * max(out_itemsize, 4))
    vmem_limit = int(min(100 * 1024 * 1024,
                         max(32 * 1024 * 1024, 2 * est_vmem)))

    out_flat = pl.pallas_call(
        _im2col_matmul_kernel,
        out_shape=jax.ShapeDtypeStruct((M_pad, N_pad), out_dtype),
        grid_spec=pltpu.PrefetchScalarGridSpec(
            num_scalar_prefetch=0,
            grid=(grid_m,),
            in_specs=[
                # im2col tile (tm, 9*C): streamed / double-buffered along M.
                pl.BlockSpec((tm, K9), lambda m: (m, 0)),
                # full weight (9*C, N_pad): constant block index -> DMA'd once
                # and kept VMEM-resident for the whole grid.
                pl.BlockSpec((K9, N_pad), lambda m: (0, 0)),
                # bias row (1, N_pad): resident.
                pl.BlockSpec((1, N_pad), lambda m: (0, 0)),
            ],
            out_specs=pl.BlockSpec((tm, N_pad), lambda m: (m, 0)),
        ),
        compiler_params=pltpu.CompilerParams(
            dimension_semantics=("parallel",),
            vmem_limit_bytes=vmem_limit,
        ),
        cost_estimate=pl.CostEstimate(flops=flops, transcendentals=0,
                                      bytes_accessed=bytes_accessed),
    )(patches, w2, b2)

    out = out_flat
    if M_pad != M or N_pad != Co:
        out = out_flat[:M, :Co]
    return out.reshape(B, Ho, Wo, Co)


def downsample_forward(x_nchw, weight, bias, **kwargs):
    """PyTorch-layout wrapper: NCHW in / NCHW out (matches nn.Conv2d).

    Prefer calling downsample_forward_nhwc directly from an NHWC pipeline to
    avoid the two full-HBM-pass layout transposes below.
    """
    x_nhwc = jnp.transpose(x_nchw, (0, 2, 3, 1))
    out_nhwc = downsample_forward_nhwc(x_nhwc, weight, bias, **kwargs)
    return jnp.transpose(out_nhwc, (0, 3, 1, 2))


if __name__ == "__main__":
    key = jax.random.PRNGKey(0)
    k_x, k_w, k_b = jax.random.split(key, 3)

    B, C, H, W = 2, 4, 16, 16
    x = jax.random.normal(k_x, (B, C, H, W), dtype=jnp.float32)

    # Deterministic parameter init (shapes follow nn.Conv2d(C, C, 3)).
    fan_in = C * 3 * 3
    bound = 1.0 / jnp.sqrt(fan_in)
    weight = jax.random.uniform(k_w, (C, C, 3, 3), minval=-bound, maxval=bound,
                                dtype=jnp.float32)
    bias = jax.random.uniform(k_b, (C,), minval=-bound, maxval=bound,
                              dtype=jnp.float32)

    fwd = jax.jit(downsample_forward)
    y = jax.block_until_ready(fwd(x, weight, bias))

    # Reference check against XLA's conv (NCHW, OIHW, stride 2, pad 1).
    y_ref = jax.lax.conv_general_dilated(
        x, weight, window_strides=(2, 2), padding=((1, 1), (1, 1)),
        dimension_numbers=("NCHW", "OIHW", "NCHW"),
    ) + bias.reshape(1, C, 1, 1)
    assert y.shape == (B, C, H // 2, W // 2), y.shape
    max_err = float(jnp.max(jnp.abs(y - y_ref)))
    # bf16 MXU operands (f32 accumulation) -> loosened tolerance vs f32 ref.
    assert max_err < 5e-2, max_err

    print("KERNEL_OK")
</pallas_src>

<mosaic_0001>
module attributes {stable_mosaic.version = 11 : i64} {
  func.func @_im2col_matmul_kernel(%arg0: i32, %arg1: memref<64x36xbf16, #tpu.memory_space<vmem>>, %arg2: memref<36x128xbf16, #tpu.memory_space<vmem>>, %arg3: memref<1x128xf32, #tpu.memory_space<vmem>>, %arg4: memref<64x128xf32, #tpu.memory_space<vmem>>) attributes {dimension_semantics = [#tpu.dimension_semantics<parallel>], iteration_bounds = array<i64: 2>, scalar_prefetch = 0 : i64, scratch_operands = 0 : i64, tpu.core_type = #tpu.core_type<tc>, window_params = [{transform_indices = @transform_0, window_bounds = array<i64: 64, 36>}, {pipeline_mode = #tpu.pipeline_mode<synchronous>, transform_indices = @transform_1, window_bounds = array<i64: 36, 128>}, {pipeline_mode = #tpu.pipeline_mode<synchronous>, transform_indices = @transform_2, window_bounds = array<i64: 1, 128>}, {transform_indices = @transform_3, window_bounds = array<i64: 64, 128>}]} {
    %c0 = arith.constant 0 : index
    %c0_0 = arith.constant 0 : index
    %0 = vector.load %arg1[%c0, %c0_0] : memref<64x36xbf16, #tpu.memory_space<vmem>>, vector<64x36xbf16>
    %c0_1 = arith.constant 0 : index
    %c0_2 = arith.constant 0 : index
    %1 = vector.load %arg2[%c0_1, %c0_2] : memref<36x128xbf16, #tpu.memory_space<vmem>>, vector<36x128xbf16>
    %cst = arith.constant dense<0.000000e+00> : vector<64x128xf32>
    %2 = tpu.matmul %0, %1, %cst {dimension_numbers = #tpu.dot_dimension_numbers<[1], [0], [0], [1], [0, 0, 1, 1], [], []>} : vector<64x36xbf16>, vector<36x128xbf16>, vector<64x128xf32> -> vector<64x128xf32>
    %c0_3 = arith.constant 0 : index
    %c0_4 = arith.constant 0 : index
    %3 = vector.load %arg3[%c0_3, %c0_4] : memref<1x128xf32, #tpu.memory_space<vmem>>, vector<1x128xf32>
    %4 = vector.broadcast %3 : vector<1x128xf32> to vector<64x128xf32>
    %5 = arith.addf %2, %4 : vector<64x128xf32>
    %c0_5 = arith.constant 0 : index
    %c0_6 = arith.constant 0 : index
    %6 = vector.load %arg4[%c0_5, %c0_6] : memref<64x128xf32, #tpu.memory_space<vmem>>, vector<64x128xf32>
    tpu.vector_store %arg4[%c0_5, %c0_6], %5 {strides = array<i32>} : memref<64x128xf32, #tpu.memory_space<vmem>>, vector<64x128xf32>,
    return
  }
  func.func @transform_0(%arg0: i32) -> (i32, i32) {
    %c0_i32 = arith.constant 0 : i32
    %c0_i32_0 = arith.constant 0 : i32
    return %arg0, %c0_i32 : i32, i32
  }
  func.func @transform_1(%arg0: i32) -> (i32, i32) {
    %c0_i32 = arith.constant 0 : i32
    %c0_i32_0 = arith.constant 0 : i32
    %c0_i32_1 = arith.constant 0 : i32
    return %c0_i32, %c0_i32_0 : i32, i32
  }
  func.func @transform_2(%arg0: i32) -> (i32, i32) {
    %c0_i32 = arith.constant 0 : i32
    %c0_i32_0 = arith.constant 0 : i32
    %c0_i32_1 = arith.constant 0 : i32
    return %c0_i32, %c0_i32_0 : i32, i32
  }
  func.func @transform_3(%arg0: i32) -> (i32, i32) {
    %c0_i32 = arith.constant 0 : i32
    %c0_i32_0 = arith.constant 0 : i32
    return %arg0, %c0_i32 : i32, i32
  }
}

</mosaic_0001>

<llo_original>
// kernel: downsample_forward.1
$region0: #{downsample_forward.1}
  #allocation0 [shape = 'u32[]', space=smem, size = 0x4, offset = 0x4, fixed_abs, tag = 'smem constant byte address 0x4 - core index']
  #allocation1 [shape = 'u32[144,128]{1,0:T(1,128)}', space=vmem, size = 0x12000, scoped, tag = 'internal scratch']
  %s0 = inlined_call_operand.vmem [shape: bf16[128,36], index: 0, kind: input, shape index: {}]
  %s1 = inlined_call_operand.vmem [shape: bf16[36,128], index: 1, kind: input, shape index: {}]
  %s2 = inlined_call_operand.vmem [shape: f32[1,128], index: 2, kind: input, shape index: {}]
  %s3 = inlined_call_operand.vmem [shape: f32[128,128], index: 3, kind: output, shape index: {}]
  %s4 = sld [smem:[#allocation0]]
  $region45: #{downsample_forward.1} parent=0
    _
  %s6 = ssub.s32 1, %s4
  %s7 = scalar_select 0, %s6, %s4
  loop: start=0, step=1, limit=4
  $region2: #{downsample_forward.1} parent=0 // loop_pre_header
    _
  $region3: #{downsample_forward.1} parent=0 // loop_header
    %s9 = sphi 0, %s13
    %p10 = scmp.ge.s32.totalorder %s9, 4
    %s19 = sphi 0, %s21
    %s22 = sphi 0, %s19
    %s23 = sphi 0, %s22
    %s39 = sphi 0, %s23
    %s43 = sphi 0, %s43
    %s45 = sphi 0, %s43
    %s46 = sphi 0, %s45
    %s60 = sphi 0, %s46
    %s64 = sphi 0, %s64
    %s66 = sphi 0, %s64
    %s67 = sphi 0, %s66
    %s81 = sphi 0, %s67
    %s87 = sphi 0, %s89
    %s90 = sphi 0, %s87
    %s91 = sphi 0, %s90
    %s107 = sphi 0, %s91
  $region4: #{downsample_forward.1} parent=0 // loop_header_branch
    %12 = sbr.rel (%p10) target = $region8
  $region5: #{downsample_forward.1} parent=0 // loop_body
    %s14 = ssub.s32 %s9, 1
    %s15 = ssub.s32 %s9, 2
    %s16 = sadd.s32 %s9, 1
    %s17 = ssub.s32 %s9, %s16
    %p18 = scmp.eq.s32.totalorder %s17, 0
    %s20 = sadd.s32 %s19, 1
    %s21 = scalar_select %p18, %s19, %s20
    %p24 = pneg %p18
    %p25 = scmp.eq.s32.totalorder %s9, 1
    %p26 = por %p24, %p25
    %p27 = scmp.ne.s32.totalorder %s19, %s22
    %p28 = scmp.eq.s32.totalorder %s9, 0
    %p29 = por %p27, %p28
    %p30 = scmp.ne.s32.totalorder %s19, %s22
    %p31 = scmp.eq.s32.totalorder %s14, 1
    %p32 = por %p30, %p31
    %p33 = scmp.ne.s32.totalorder %s22, %s23
    %p34 = scmp.eq.s32.totalorder %s14, 0
    %p35 = por %p33, %p34
    %p36 = scmp.ne.s32.totalorder %s22, %s23
    %p37 = scmp.eq.s32.totalorder %s15, 1
    %p38 = por %p36, %p37
    %p40 = scmp.ne.s32.totalorder %s23, %s39
    %p41 = scmp.eq.s32.totalorder %s15, 0
    %p42 = por %p40, %p41
    %s44 = sadd.s32 %s43, 1
    %p47 = scmp.eq.s32.totalorder %s9, 1
    %p48 = scmp.ne.s32.totalorder %s43, %s45
    %p49 = scmp.eq.s32.totalorder %s9, 0
    %p50 = por %p48, %p49
    %p51 = scmp.ne.s32.totalorder %s43, %s45
    %p52 = scmp.eq.s32.totalorder %s14, 1
    %p53 = por %p51, %p52
    %p54 = scmp.ne.s32.totalorder %s45, %s46
    %p55 = scmp.eq.s32.totalorder %s14, 0
    %p56 = por %p54, %p55
    %p57 = scmp.ne.s32.totalorder %s45, %s46
    %p58 = scmp.eq.s32.totalorder %s15, 1
    %p59 = por %p57, %p58
    %p61 = scmp.ne.s32.totalorder %s46, %s60
    %p62 = scmp.eq.s32.totalorder %s15, 0
    %p63 = por %p61, %p62
    %s65 = sadd.s32 %s64, 1
    %p68 = scmp.eq.s32.totalorder %s9, 1
    %p69 = scmp.ne.s32.totalorder %s64, %s66
    %p70 = scmp.eq.s32.totalorder %s9, 0
    %p71 = por %p69, %p70
    %p72 = scmp.ne.s32.totalorder %s64, %s66
    %p73 = scmp.eq.s32.totalorder %s14, 1
    %p74 = por %p72, %p73
    %p75 = scmp.ne.s32.totalorder %s66, %s67
    %p76 = scmp.eq.s32.totalorder %s14, 0
    %p77 = por %p75, %p76
    %p78 = scmp.ne.s32.totalorder %s66, %s67
    %p79 = scmp.eq.s32.totalorder %s15, 1
    %p80 = por %p78, %p79
    %p82 = scmp.ne.s32.totalorder %s67, %s81
    %p83 = scmp.eq.s32.totalorder %s15, 0
    %p84 = por %p82, %p83
    %s85 = ssub.s32 %s9, %s16
    %p86 = scmp.eq.s32.totalorder %s85, 0
    %s88 = sadd.s32 %s87, 1
    %s89 = scalar_select %p86, %s87, %s88
    %p92 = pneg %p86
    %p93 = scmp.eq.s32.totalorder %s9, 1
    %p94 = por %p92, %p93
    %p95 = scmp.ne.s32.totalorder %s87, %s90
    %p96 = scmp.eq.s32.totalorder %s9, 0
    %p97 = por %p95, %p96
    %p98 = scmp.ne.s32.totalorder %s87, %s90
    %p99 = scmp.eq.s32.totalorder %s14, 1
    %p100 = por %p98, %p99
    %p101 = scmp.ne.s32.totalorder %s90, %s91
    %p102 = scmp.eq.s32.totalorder %s14, 0
    %p103 = por %p101, %p102
    %p104 = scmp.ne.s32.totalorder %s90, %s91
    %p105 = scmp.eq.s32.totalorder %s15, 1
    %p106 = por %p104, %p105
    %p108 = scmp.ne.s32.totalorder %s91, %s107
    %p109 = scmp.eq.s32.totalorder %s15, 0
    %p110 = por %p108, %p109
    %p111 = scmp.le.s32.totalorder 1, %s9
    %p112 = scmp.lt.s32.totalorder %s9, 3
    %p113 = pnand %p111, %p112
    %p114 = pneg %p113
    // Predicated region
    $region9: #{downsample_forward.1} parent=5 // pred_check
      _
    $region10: #{downsample_forward.1} parent=5 // pred_check_branch
      %116 = sbr.rel (%p113) target = $region12
    $region11: #{downsample_forward.1} parent=5 // pred_region
      %s117 = ssub.s32 %s9, 1
      // Predicated region
      $region13: #{downsample_forward.1} parent=11 // pred_check
        %p118 = pneg %p56
      $region14: #{downsample_forward.1} parent=11 // pred_check_branch
        %120 = sbr.rel (%p118) target = $region16
      $region15: #{downsample_forward.1} parent=11 // pred_region
        _
      $region16: #{downsample_forward.1} parent=11 // pred_fallthru
        _
      // Predicated region
      $region17: #{downsample_forward.1} parent=11 // pred_check
        %p121 = pneg %p77
      $region18: #{downsample_forward.1} parent=11 // pred_check_branch
        %123 = sbr.rel (%p121) target = $region20
      $region19: #{downsample_forward.1} parent=11 // pred_region
        _
      $region20: #{downsample_forward.1} parent=11 // pred_fallthru
        _
    $region12: #{downsample_forward.1} parent=5 // pred_fallthru
      _
    %p124 = scmp.lt.s32.totalorder %s9, 2
    // Predicated region
    $region21: #{downsample_forward.1} parent=5 // pred_check
      %p125 = pneg %p124
    $region22: #{downsample_forward.1} parent=5 // pred_check_branch
      %127 = sbr.rel (%p125) target = $region24
    $region23: #{downsample_forward.1} parent=5 // pred_region
      // Predicated region
      $region25: #{downsample_forward.1} parent=23 // pred_check
        %p128 = pneg %p29
      $region26: #{downsample_forward.1} parent=23 // pred_check_branch
        %130 = sbr.rel (%p128) target = $region28
      $region27: #{downsample_forward.1} parent=23 // pred_region
        %s131 = smul.u32 8, %s9
        %p132 = scmp.lt.s32.totalorder %s131, 15
        %s133 = scalar_select %p132, %s131, 15
        %s134 = smul.addr %s133, 4
        %s135 = scalar_lea.vmem %s0, %s134
        %s136 = smul.u32 8, %s9
      $region28: #{downsample_forward.1} parent=23 // pred_fallthru
        _
    $region24: #{downsample_forward.1} parent=5 // pred_fallthru
      _
    %p137 = scmp.le.s32.totalorder 1, %s9
    %p138 = scmp.lt.s32.totalorder %s9, 3
    %p139 = pnand %p137, %p138
    %p140 = pneg %p139
    // Predicated region
    $region29: #{downsample_forward.1} parent=5 // pred_check
      _
    $region30: #{downsample_forward.1} parent=5 // pred_check_branch
      %142 = sbr.rel (%p139) target = $region32
    $region31: #{downsample_forward.1} parent=5 // pred_region
      %s143 = ssub.s32 %s9, 1
      %s144 = smul.u32 8, %s14
      %p145 = scmp.lt.s32.totalorder %s144, 15
      %s146 = scalar_select %p145, %s144, 15
      %s147 = smul.addr %s146, 4
      %s148 = scalar_lea.vmem %s0, %s147
      %p149 = pneg %p35
      %p150 = pneg %p32
      %p151 = pneg %p56
      %p152 = pneg %p53
      %p153 = pneg %p77
      %p154 = pneg %p74
      %p155 = pneg %p103
      %p156 = pneg %p100
      %s157 = smul.u32 8, %s14
      %p158 = scmp.lt.s32.totalorder %s157, 15
      %s159 = scalar_select %p158, %s157, 15
      %s160 = smul.addr %s159, 8
      %s161 = scalar_lea.vmem %s3, %s160
      %s162 = smul.u32 8, %s14
      %p163 = scmp.lt.s32.totalorder %s162, 15
      %s164 = scalar_select %p163, %s162, 15
      %s165 = smul.addr %s164, 4
      %s166 = scalar_lea.vmem %s0, %s165
      %s167 = smul.u32 8, %s14
      %s168 = smul.u32 8, %s14
      %p169 = scmp.lt.s32.totalorder %s168, 15
      %s170 = scalar_select %p169, %s168, 15
      %s171 = smul.addr %s170, 8
      %s172 = scalar_lea.vmem %s3, %s171
      %s173 = smul.u32 8, %s14
      %v175 = vld [vmem:[%s166] sm:$0xf]
      %v176 = vld [vmem:[%s166 + $0x4] sm:$0xf]
      %v177 = vld [vmem:[%s166 + $0x8] sm:$0xf]
      %v178 = vld [vmem:[%s166 + $0xc] sm:$0xf]
      %v179 = vld [vmem:[%s166 + $0x10] sm:$0xf]
      %v180 = vld [vmem:[%s166 + $0x14] sm:$0xf]
      %v181 = vld [vmem:[%s166 + $0x18] sm:$0xf]
      %v182 = vld [vmem:[%s166 + $0x1c] sm:$0xf]
      %v183 = vld [vmem:[%s1] sm:$0xf]
      %v184 = vld [vmem:[%s1 + $0x4] sm:$0xf]
      %v185 = vld [vmem:[%s1 + $0x8] sm:$0xf]
      %v186 = vld [vmem:[%s1 + $0xc] sm:$0xf]
      %v187 = vld [vmem:[%s1 + $0x10] sm:$0x3]
      %v188 = vld [vmem:[%s2] sm:$0x1]
      %v190 = vlaneseq
      %v191 = vshrl.u32 %v190, 7
      %v192 = vsub.s32 0, %v191
      %v193 = vrot.slane %v188, %v192
      %v203 = vunpack.c.l.b16 %v175
      %v204 = vunpack.c.l.b16 %v176
      %v205 = vunpack.c.l.b16 %v177
      %v206 = vunpack.c.l.b16 %v178
      %v207 = vunpack.c.l.b16 %v179
      %v208 = vunpack.c.l.b16 %v180
      %v209 = vunpack.c.l.b16 %v181
      %v210 = vunpack.c.l.b16 %v182
      %v211 = vpack.c.b16 %v204, %v203
      %v212 = vpack.c.b16 %v206, %v205
      %v213 = vpack.c.b16 %v208, %v207
      %v214 = vpack.c.b16 %v210, %v209
      %v220 = vunpack.c.l.b16 %v183
      %v221 = vunpack.c.l.b16 %v184
      %v222 = vunpack.c.l.b16 %v185
      %v223 = vunpack.c.l.b16 %v186
      %v224 = vunpack.c.l.b16 %v187
      %v225 = vpack.c.b16 %v221, %v220
      %v226 = vpack.c.b16 %v223, %v222
      %v227 = vpack.c.b16 %v224, %v224
      %vm230 = vcmask 293888
      %v232 = vsel %vm230, %v211, 0
      %v235 = vsel %vm230, %v212, 0
      %v238 = vsel %vm230, %v213, 0
      %v241 = vsel %vm230, %v214, 0
      %vm243 = vcmask 1041408
      %v245 = vsel %vm243, %v227, 0
      %247 = vmatprep.subr.bf16.mxu0 0
      %248 = vmatpush1.bf16.msra.mxu0 %v225
      %249 = vmatprep.subr.bf16.mxu0 0
      %250 = vmatpush1.bf16.msra.mxu0 %v226
      %251 = vmatprep.subr.bf16.mxu0 0
      %252 = vmatpush1.bf16.msra.mxu0 %v245
      %253 = vmatprep.subr.bf16.mxu0 0
      %254 = vmatpush1.bf16.msra.mxu0 0
      %255 = vmatprep.subr.bf16.mxu0 0
      %256 = vmatpush1.bf16.msra.mxu0 0
      %257 = vmatprep.subr.bf16.mxu0 0
      %258 = vmatpush1.bf16.msra.mxu0 0
      %259 = vmatprep.subr.bf16.mxu0 0
      %260 = vmatpush1.bf16.msra.mxu0 0
      %261 = vmatprep.subr.bf16.mxu0 0
      %262 = vmatpush1.bf16.msra.mxu0 0
      %263 = vmatprep.subr.bf16.mxu0 0
      %264 = vmatpush1.bf16.msra.mxu0 0
      %265 = vmatprep.subr.bf16.mxu0 0
      %266 = vmatpush1.bf16.msra.mxu0 0
      %267 = vmatprep.subr.bf16.mxu0 0
      %268 = vmatpush1.bf16.msra.mxu0 0
      %269 = vmatprep.subr.bf16.mxu0 0
      %270 = vmatpush1.bf16.msra.mxu0 0
      %271 = vmatprep.subr.bf16.mxu0 0
      %272 = vmatpush1.bf16.msra.mxu0 0
      %273 = vmatprep.subr.bf16.mxu0 0
      %274 = vmatpush1.bf16.msra.mxu0 0
      %275 = vmatprep.subr.bf16.mxu0 0
      %276 = vmatpush1.bf16.msra.mxu0 0
      %277 = vmatprep.subr.bf16.mxu0 0
      %278 = vmatpush1.bf16.msra.mxu0 0
      %279 = vmatprep.mubr.bf16.mxu0 0
      %280 = vmatmul.mubr.bf16.gmra.mrb[0].mxu0 %v232
      %v281 = vpop.f32.mrb[0].mxu0
      %v282 = vadd.f32 %v193, %v281
      %v283 = vpop.f32.mrb[0].mxu0
      %v284 = vpop.f32.mrb[0].mxu0
      %v285 = vadd.f32 %v193, %v284
      %v286 = vpop.f32.mrb[0].mxu0
      %287 = vmatprep.mubr.bf16.mxu0 0
      %288 = vmatmul.mubr.bf16.gmra.mrb[0].mxu0 %v235
      %v289 = vpop.f32.mrb[0].mxu0
      %v290 = vadd.f32 %v193, %v289
      %v291 = vpop.f32.mrb[0].mxu0
      %v292 = vpop.f32.mrb[0].mxu0
      %v293 = vadd.f32 %v193, %v292
      %v294 = vpop.f32.mrb[0].mxu0
      %295 = vmatprep.mubr.bf16.mxu0 0
      %296 = vmatmul.mubr.bf16.gmra.mrb[0].mxu0 %v238
      %v297 = vpop.f32.mrb[0].mxu0
      %v298 = vadd.f32 %v193, %v297
      %v299 = vpop.f32.mrb[0].mxu0
      %v300 = vpop.f32.mrb[0].mxu0
      %v301 = vadd.f32 %v193, %v300
      %v302 = vpop.f32.mrb[0].mxu0
      %303 = vmatprep.mubr.bf16.mxu0 0
      %304 = vmatmul.mubr.bf16.gmra.mrb[0].mxu0 %v241
      %v305 = vpop.f32.mrb[0].mxu0
      %v306 = vadd.f32 %v193, %v305
      %v307 = vpop.f32.mrb[0].mxu0
      %v308 = vpop.f32.mrb[0].mxu0
      %v309 = vadd.f32 %v193, %v308
      %v310 = vpop.f32.mrb[0].mxu0
      %311 = vdwg.mxu0
      %312 = vst [vmem:[%s172] sm:$0xff] %v282
      %313 = vst [vmem:[%s172 + $0x8] sm:$0xff] %v285
      %314 = vst [vmem:[%s172 + $0x10] sm:$0xff] %v290
      %315 = vst [vmem:[%s172 + $0x18] sm:$0xff] %v293
      %316 = vst [vmem:[%s172 + $0x20] sm:$0xff] %v298
      %317 = vst [vmem:[%s172 + $0x28] sm:$0xff] %v301
      %318 = vst [vmem:[%s172 + $0x30] sm:$0xff] %v306
      %319 = vst [vmem:[%s172 + $0x38] sm:$0xff] %v309
      %s320 = smul.u32 8, %s14
      %p321 = scmp.lt.s32.totalorder %s320, 15
      %s322 = scalar_select %p321, %s320, 15
      %s323 = smul.addr %s322, 8
      %s324 = scalar_lea.vmem %s3, %s323
      // Predicated region
      $region33: #{downsample_forward.1} parent=31 // pred_check
        %p325 = pneg %p100
      $region34: #{downsample_forward.1} parent=31 // pred_check_branch
        %327 = sbr.rel (%p325) target = $region36
      $region35: #{downsample_forward.1} parent=31 // pred_region
        %s328 = smul.u32 8, %s14
      $region36: #{downsample_forward.1} parent=31 // pred_fallthru
        _
    $region32: #{downsample_forward.1} parent=5 // pred_fallthru
      _
    %p329 = scmp.le.s32.totalorder 2, %s9
    // Predicated region
    $region37: #{downsample_forward.1} parent=5 // pred_check
      %p330 = pneg %p329
    $region38: #{downsample_forward.1} parent=5 // pred_check_branch
      %332 = sbr.rel (%p330) target = $region40
    $region39: #{downsample_forward.1} parent=5 // pred_region
      %s333 = ssub.s32 %s9, 2
      // Predicated region
      $region41: #{downsample_forward.1} parent=39 // pred_check
        %p334 = pneg %p106
      $region42: #{downsample_forward.1} parent=39 // pred_check_branch
        %336 = sbr.rel (%p334) target = $region44
      $region43: #{downsample_forward.1} parent=39 // pred_region
        %s337 = smul.u32 8, %s15
        %p338 = scmp.lt.s32.totalorder %s337, 15
        %s339 = scalar_select %p338, %s337, 15
        %s340 = smul.addr %s339, 8
        %s341 = scalar_lea.vmem %s3, %s340
      $region44: #{downsample_forward.1} parent=39 // pred_fallthru
        _
    $region40: #{downsample_forward.1} parent=5 // pred_fallthru
      _
  $region6: #{downsample_forward.1} parent=0 // loop_footer
    %s13 = sadd.s32 1, %s9
  $region7: #{downsample_forward.1} parent=0 // loop_footer_branch
    %8 = sbr.rel target = $region3
  $region8: #{downsample_forward.1} parent=0 // loop_exit
    _

</llo_original>
